<compile_context>
chip_gen: v7x
topology: tpu7x:2x2x1
jax: 0.10.0
libtpu: 0.0.40
codegen_flags: <defaults>
</compile_context>

<pallas_src>
import jax
import jax.numpy as jnp
from jax import lax
from jax.experimental import pallas as pl
from jax.experimental.pallas import tpu as pltpu

EPS = 1e-5
_SUB_OFF = 8      # tile-aligned sublane offset of the image inside pad scratch
_LANE_OFF = 128   # tile-aligned lane offset of the image inside pad scratch


# --------------------------------------------------------------------------
# Kernel 1: d = xt - xs (written once, NCHW) + per-channel batch statistics.
# --------------------------------------------------------------------------
def diff_stats_kernel(xs_ref, xt_ref, d_ref, sum_ref, sq_ref):
    n = pl.program_id(0)

    @pl.when(n == 0)
    def _():
        sum_ref[...] = jnp.zeros_like(sum_ref)
        sq_ref[...] = jnp.zeros_like(sq_ref)

    d = xt_ref[...] - xs_ref[...]                                    # (Ci, H, W)
    d_ref[...] = d
    sum_ref[...] += jnp.sum(jnp.sum(d, axis=-1), axis=-1, keepdims=True)
    sq_ref[...] += jnp.sum(jnp.sum(d * d, axis=-1), axis=-1, keepdims=True)


# --------------------------------------------------------------------------
# Kernel 2: fused BN1 + ReLU + 3x3 conv (9 whole-image matmuls) + BN2 stats.
# --------------------------------------------------------------------------
def conv1_kernel(d_ref, ay_ref, sc_ref, sh_ref, w_ref, b_ref,
                 h1_ref, sum_ref, sq_ref, pad_ref):
    n = pl.program_id(0)
    H, W, Ci = d_ref.shape
    Cin = pad_ref.shape[-1]
    Ch = b_ref.shape[1]
    HW = H * W
    S = _SUB_OFF

    @pl.when(n == 0)
    def _():
        sum_ref[...] = jnp.zeros_like(sum_ref)
        sq_ref[...] = jnp.zeros_like(sq_ref)
        pad_ref[...] = jnp.zeros_like(pad_ref)       # zero halo, paid once

    # BN1 + ReLU on the image-difference channels.
    a_d = jnp.maximum(d_ref[...] * sc_ref[...].reshape(1, 1, Ci)
                      + sh_ref[...].reshape(1, 1, Ci), 0.0)
    # BN1 + ReLU of the text channels is spatially constant per sample and is
    # precomputed in the wrapper; broadcast + concatenate on the lane dim.
    a_y = jnp.broadcast_to(ay_ref[...].reshape(1, 1, Ch), (H, W, Ch))
    # aligned store: outer offset 1 (H halo), sublane offset 8 (W halo).
    pad_ref[1:H + 1, S:S + W, :] = jnp.concatenate([a_d, a_y], axis=-1)

    # 3x3 conv as 9 whole-image (H*W, Cin) @ (Cin, Ch) matmuls.
    acc = jnp.zeros((HW, Ch), jnp.float32)
    for dy in range(3):
        for dx in range(3):
            win = pad_ref[dy:dy + H, S - 1 + dx:S - 1 + dx + W, :]   # (H, W, Cin)
            acc = acc + jnp.dot(win.reshape(HW, Cin), w_ref[dy * 3 + dx],
                                preferred_element_type=jnp.float32)
    acc = acc + b_ref[...]                                           # bias once
    h1_ref[...] = acc                                                # (HW, Ch)

    # batch statistics of the conv output (for BN2)
    sum_ref[...] += jnp.sum(acc, axis=0, keepdims=True)
    sq_ref[...] += jnp.sum(acc * acc, axis=0, keepdims=True)


# --------------------------------------------------------------------------
# Kernel 3: fused BN2 + ReLU + 3x3 gate conv (VPU) + sigmoid + residual gate.
# Channel-planar layout: output is produced directly in NCHW, gate as (H, W).
# --------------------------------------------------------------------------
def conv2_gate_kernel(h1_ref, xs_ref, xt_ref, sc_ref, sh_ref, w2_ref,
                      scal_ref, out_ref, gate_ref, pad_ref):
    Ch, H, W = h1_ref.shape
    S = _SUB_OFF
    L = _LANE_OFF

    # Re-zero the scratch each step (keeps the halo ring zero and keeps the
    # grid axis safely "parallel" for megacore sharding on v7x).
    pad_ref[...] = jnp.zeros_like(pad_ref)

    # BN2 + ReLU, per-channel affine broadcast over (H, W).
    a = jnp.maximum(h1_ref[...] * sc_ref[...] + sh_ref[...], 0.0)    # (Ch, H, W)
    pad_ref[:, S:S + H, L:L + W] = a                                 # aligned store

    # gate_dim == 1: 3x3 conv as 9 per-tap per-channel VPU multiply-adds,
    # then a reduction over the (leading) channel axis -- no MXU waste.
    w2v = w2_ref[...]                                                # (Ch, 1, 9)
    t = jnp.zeros((Ch, H, W), jnp.float32)
    for dy in range(3):
        for dx in range(3):
            win = pad_ref[:, S - 1 + dy:S - 1 + dy + H,
                          L - 1 + dx:L - 1 + dx + W]                 # (Ch, H, W)
            t = t + win * w2v[:, :, dy * 3 + dx:dy * 3 + dx + 1]     # (Ch,1,1)
    logit = jnp.sum(t, axis=0) + scal_ref[0]                         # (H, W)
    g = jax.nn.sigmoid(logit)
    gate_ref[...] = g                                                # (H, W)

    # Residual gating, computed and stored directly in NCHW layout.
    wg = scal_ref[1]
    wr = scal_ref[2]
    g3 = g.reshape(1, H, W)
    out_ref[...] = (wg * (g3 * xs_ref[...])
                    + wr * ((1.0 - g3) * xt_ref[...]))               # (Ci, H, W)


# --------------------------------------------------------------------------
# Wrapper
# --------------------------------------------------------------------------
def tidg_forward_pallas(xs_nchw, xt_nchw, y, params):
    N, Ci, H, W = xs_nchw.shape
    xs = xs_nchw.astype(jnp.float32)
    xt = xt_nchw.astype(jnp.float32)
    y = y.astype(jnp.float32)
    Td = y.shape[1]
    Ch = params['w_emb'].shape[0]                  # hidden_dim
    Cin = Ci + Ch
    HW = H * W
    cnt = N * H * W

    # ---- 1) text embedding (1x1 conv == tiny matmul), folded into wrapper --
    w_emb = params['w_emb'].reshape(Ch, Td)
    y_emb = y @ w_emb.T + params['b_emb'].reshape(1, Ch)             # (N, Ch)

    # ---- 2) d = xt - xs (materialized once) + BN1 batch statistics ---------
    d_nchw, sum_d, sq_d = pl.pallas_call(
        diff_stats_kernel,
        grid=(N,),
        in_specs=[pl.BlockSpec((None, Ci, H, W), lambda n: (n, 0, 0, 0)),
                  pl.BlockSpec((None, Ci, H, W), lambda n: (n, 0, 0, 0))],
        out_specs=[pl.BlockSpec((None, Ci, H, W), lambda n: (n, 0, 0, 0)),
                   pl.BlockSpec((Ci, 1), lambda n: (0, 0)),
                   pl.BlockSpec((Ci, 1), lambda n: (0, 0))],
        out_shape=[jax.ShapeDtypeStruct((N, Ci, H, W), jnp.float32),
                   jax.ShapeDtypeStruct((Ci, 1), jnp.float32),
                   jax.ShapeDtypeStruct((Ci, 1), jnp.float32)],
        compiler_params=pltpu.CompilerParams(dimension_semantics=("arbitrary",)),
    )(xs, xt)

    mean_d = sum_d[:, 0] / cnt
    var_d = jnp.maximum(sq_d[:, 0] / cnt - mean_d ** 2, 0.0)
    # text channels are spatially constant -> stats reduce to batch stats of y_emb
    mean_y = jnp.mean(y_emb, axis=0)
    var_y = jnp.mean((y_emb - mean_y) ** 2, axis=0)

    g1 = params['gamma1']
    be1 = params['beta1']
    inv_d = g1[:Ci] / jnp.sqrt(var_d + EPS)
    scale1_d = inv_d.reshape(1, Ci)
    shift1_d = (be1[:Ci] - mean_d * inv_d).reshape(1, Ci)
    inv_y = g1[Ci:] / jnp.sqrt(var_y + EPS)
    # BN1 + ReLU of the text channels, spatially constant -> once per sample.
    a_y = jnp.maximum(y_emb * inv_y.reshape(1, Ch)
                      + (be1[Ci:] - mean_y * inv_y).reshape(1, Ch), 0.0)
    a_y3 = a_y.reshape(N, 1, Ch)

    # Channels-last view of d feeds the MXU conv (single XLA transpose; xs/xt
    # themselves never get transposed any more).
    d_nhwc = jnp.transpose(d_nchw, (0, 2, 3, 1))

    w1 = jnp.transpose(params['w1'], (2, 3, 1, 0)).reshape(9, Cin, Ch)
    b1 = params['b1'].reshape(1, Ch)

    # ---- 3) BN1 + ReLU + conv3x3 (+ BN2 stats) ------------------------------
    h1, sum_h, sq_h = pl.pallas_call(
        conv1_kernel,
        grid=(N,),
        in_specs=[pl.BlockSpec((None, H, W, Ci), lambda n: (n, 0, 0, 0)),
                  pl.BlockSpec((None, 1, Ch), lambda n: (n, 0, 0)),
                  pl.BlockSpec((1, Ci), lambda n: (0, 0)),
                  pl.BlockSpec((1, Ci), lambda n: (0, 0)),
                  pl.BlockSpec((9, Cin, Ch), lambda n: (0, 0, 0)),
                  pl.BlockSpec((1, Ch), lambda n: (0, 0))],
        out_specs=[pl.BlockSpec((None, HW, Ch), lambda n: (n, 0, 0)),
                   pl.BlockSpec((1, Ch), lambda n: (0, 0)),
                   pl.BlockSpec((1, Ch), lambda n: (0, 0))],
        out_shape=[jax.ShapeDtypeStruct((N, HW, Ch), jnp.float32),
                   jax.ShapeDtypeStruct((1, Ch), jnp.float32),
                   jax.ShapeDtypeStruct((1, Ch), jnp.float32)],
        scratch_shapes=[pltpu.VMEM((H + 2, W + _SUB_OFF + 1, Cin), jnp.float32)],
        compiler_params=pltpu.CompilerParams(dimension_semantics=("arbitrary",)),
    )(d_nhwc, a_y3, scale1_d, shift1_d, w1, b1)

    # ---- BN2 scale/shift -----------------------------------------------------
    mean2 = sum_h[0] / cnt
    var2 = jnp.maximum(sq_h[0] / cnt - mean2 ** 2, 0.0)
    inv2 = params['gamma2'] / jnp.sqrt(var2 + EPS)
    scale2 = inv2.reshape(Ch, 1, 1)
    shift2 = (params['beta2'] - mean2 * inv2).reshape(Ch, 1, 1)

    # h1 -> channel-planar (NCHW) layout for the gate/output stage.
    h1_p = jnp.transpose(h1, (0, 2, 1)).reshape(N, Ch, H, W)

    # gate conv weights folded to per-channel, per-tap scalars: (Ch, 1, 9).
    w2f = params['w2'].reshape(Ch, 9).reshape(Ch, 1, 9)
    # scalar params packed into one SMEM operand: [b2, w_gate, w_res]
    scal = jnp.concatenate([params['b2'].reshape(1),
                            params['w_gate'].reshape(1),
                            params['w_res'].reshape(1)])

    # ---- 4) BN2 + ReLU + gate conv + sigmoid + residual gating --------------
    out, gate = pl.pallas_call(
        conv2_gate_kernel,
        grid=(N,),
        in_specs=[pl.BlockSpec((None, Ch, H, W), lambda n: (n, 0, 0, 0)),
                  pl.BlockSpec((None, Ci, H, W), lambda n: (n, 0, 0, 0)),
                  pl.BlockSpec((None, Ci, H, W), lambda n: (n, 0, 0, 0)),
                  pl.BlockSpec((Ch, 1, 1), lambda n: (0, 0, 0)),
                  pl.BlockSpec((Ch, 1, 1), lambda n: (0, 0, 0)),
                  pl.BlockSpec((Ch, 1, 9), lambda n: (0, 0, 0)),
                  pl.BlockSpec(memory_space=pltpu.MemorySpace.SMEM)],
        out_specs=[pl.BlockSpec((None, Ci, H, W), lambda n: (n, 0, 0, 0)),
                   pl.BlockSpec((None, H, W), lambda n: (n, 0, 0))],
        out_shape=[jax.ShapeDtypeStruct((N, Ci, H, W), jnp.float32),
                   jax.ShapeDtypeStruct((N, H, W), jnp.float32)],
        scratch_shapes=[pltpu.VMEM((Ch, H + _SUB_OFF + 1,
                                    _LANE_OFF + W + 1), jnp.float32)],
        compiler_params=pltpu.CompilerParams(dimension_semantics=("parallel",)),
    )(h1_p, xs, xt, scale2, shift2, w2f, scal)

    # out is already NCHW; gate just needs the (free) channel-dim reshape.
    return out, gate.reshape(N, 1, H, W)

    # TODO(synk): for production H/W (>=128) and large C, tile H inside the grid
    # (halo rows), set vmem_limit_bytes, and keep h1 / weights in bf16.


# --------------------------------------------------------------------------
# Pure-JAX reference (NCHW, mirrors the PyTorch forward)
# --------------------------------------------------------------------------
def tidg_forward_ref(xs, xt, y, params):
    def bn_train(x, gamma, beta):
        mean = jnp.mean(x, axis=(0, 2, 3), keepdims=True)
        var = jnp.mean((x - mean) ** 2, axis=(0, 2, 3), keepdims=True)
        return ((x - mean) / jnp.sqrt(var + EPS) * gamma.reshape(1, -1, 1, 1)
                + beta.reshape(1, -1, 1, 1))

    def conv3x3(x, w, b):
        out = lax.conv_general_dilated(
            x, w, (1, 1), ((1, 1), (1, 1)),
            dimension_numbers=('NCHW', 'OIHW', 'NCHW'))
        return out + b.reshape(1, -1, 1, 1)

    N, Ci, H, W = xs.shape
    y4 = y[:, :, None, None]
    y_emb = lax.conv_general_dilated(
        y4, params['w_emb'], (1, 1), 'VALID',
        dimension_numbers=('NCHW', 'OIHW', 'NCHW')) + params['b_emb'].reshape(1, -1, 1, 1)
    dxt = xt - xs
    y_rep = jnp.broadcast_to(y_emb, (N, y_emb.shape[1], H, W))
    dxty = jnp.concatenate([dxt, y_rep], axis=1)
    h = jax.nn.relu(bn_train(dxty, params['gamma1'], params['beta1']))
    h = conv3x3(h, params['w1'], params['b1'])
    h = jax.nn.relu(bn_train(h, params['gamma2'], params['beta2']))
    h = conv3x3(h, params['w2'], params['b2'])
    gate = jax.nn.sigmoid(h)
    res = (1.0 - gate) * xt                     # res_mask_post=True path
    output = params['w_gate'] * (gate * xs) + params['w_res'] * res
    return output, gate


# --------------------------------------------------------------------------

if __name__ == "__main__":
    N, Ci, H, W = 2, 4, 16, 16      # batch, image_dim, spatial
    Td, Ch, Cg = 8, 8, 1            # text_dim, hidden_dim, gate_dim
    Cin = Ci + Ch

    key = jax.random.PRNGKey(0)
    ks = jax.random.split(key, 12)
    xs = jax.random.normal(ks[0], (N, Ci, H, W), jnp.float32)
    xt = jax.random.normal(ks[1], (N, Ci, H, W), jnp.float32)
    y = jax.random.normal(ks[2], (N, Td), jnp.float32)

    params = dict(
        w_emb=0.2 * jax.random.normal(ks[3], (Ch, Td, 1, 1), jnp.float32),
        b_emb=0.1 * jax.random.normal(ks[4], (Ch,), jnp.float32),
        gamma1=1.0 + 0.1 * jax.random.normal(ks[5], (Cin,), jnp.float32),
        beta1=0.1 * jax.random.normal(ks[6], (Cin,), jnp.float32),
        w1=0.2 * jax.random.normal(ks[7], (Ch, Cin, 3, 3), jnp.float32),
        b1=0.05 * jax.random.normal(ks[8], (Ch,), jnp.float32),
        gamma2=1.0 + 0.1 * jax.random.normal(ks[9], (Ch,), jnp.float32),
        beta2=0.1 * jax.random.normal(ks[10], (Ch,), jnp.float32),
        w2=0.3 * jax.random.normal(ks[11], (Cg, Ch, 3, 3), jnp.float32),
        b2=jnp.zeros((Cg,), jnp.float32),
        w_gate=jnp.ones((1,), jnp.float32),    # nn.Parameter(torch.ones(1))
        w_res=jnp.zeros((1,), jnp.float32),    # nn.Parameter(torch.zeros(1))
    )

    out, gate = tidg_forward_pallas(xs, xt, y, params)
    jax.block_until_ready((out, gate))

    ref_out, ref_gate = tidg_forward_ref(xs, xt, y, params)
    assert out.shape == (N, Ci, H, W) and gate.shape == (N, Cg, H, W)
    assert jnp.allclose(out, ref_out, atol=2e-4, rtol=2e-4)
    assert jnp.allclose(gate, ref_gate, atol=2e-4, rtol=2e-4)
    print("KERNEL_OK")
</pallas_src>

<mosaic_0001>
module attributes {stable_mosaic.version = 11 : i64} {
  func.func @diff_stats_kernel(%arg0: i32, %arg1: memref<1x4x16x16xf32, #tpu.memory_space<vmem>>, %arg2: memref<1x4x16x16xf32, #tpu.memory_space<vmem>>, %arg3: memref<1x4x16x16xf32, #tpu.memory_space<vmem>>, %arg4: memref<4x1xf32, #tpu.memory_space<vmem>>, %arg5: memref<4x1xf32, #tpu.memory_space<vmem>>) attributes {dimension_semantics = [#tpu.dimension_semantics<arbitrary>], iteration_bounds = array<i64: 2>, scalar_prefetch = 0 : i64, scratch_operands = 0 : i64, tpu.core_type = #tpu.core_type<tc>, window_params = [{transform_indices = @transform_0, window_bounds = array<i64: 1, 4, 16, 16>}, {transform_indices = @transform_1, window_bounds = array<i64: 1, 4, 16, 16>}, {transform_indices = @transform_2, window_bounds = array<i64: 1, 4, 16, 16>}, {pipeline_mode = #tpu.pipeline_mode<synchronous>, transform_indices = @transform_3, window_bounds = array<i64: 4, 1>}, {pipeline_mode = #tpu.pipeline_mode<synchronous>, transform_indices = @transform_4, window_bounds = array<i64: 4, 1>}]} {
    %c0_i32 = arith.constant 0 : i32
    %0 = arith.cmpi eq, %arg0, %c0_i32 : i32
    %1 = arith.extui %0 : i1 to i32
    %c0_i32_0 = arith.constant 0 : i32
    %2 = arith.cmpi ne, %1, %c0_i32_0 : i32
    scf.if %2 {
      %cst_23 = arith.constant 0.000000e+00 : f32
      %24 = vector.broadcast %cst_23 : f32 to vector<4x1xf32>
      %c0_24 = arith.constant 0 : index
      %c0_25 = arith.constant 0 : index
      %25 = vector.load %arg4[%c0_24, %c0_25] : memref<4x1xf32, #tpu.memory_space<vmem>>, vector<4x1xf32>
      tpu.vector_store %arg4[%c0_24, %c0_25], %24 {strides = array<i32>} : memref<4x1xf32, #tpu.memory_space<vmem>>, vector<4x1xf32>,
      %cst_26 = arith.constant 0.000000e+00 : f32
      %26 = vector.broadcast %cst_26 : f32 to vector<4x1xf32>
      %c0_27 = arith.constant 0 : index
      %c0_28 = arith.constant 0 : index
      %27 = vector.load %arg5[%c0_27, %c0_28] : memref<4x1xf32, #tpu.memory_space<vmem>>, vector<4x1xf32>
      tpu.vector_store %arg5[%c0_27, %c0_28], %26 {strides = array<i32>} : memref<4x1xf32, #tpu.memory_space<vmem>>, vector<4x1xf32>,
    } else {
    }
    %c0 = arith.constant 0 : index
    %c0_1 = arith.constant 0 : index
    %c0_2 = arith.constant 0 : index
    %c0_3 = arith.constant 0 : index
    %3 = vector.load %arg2[%c0, %c0_1, %c0_2, %c0_3] : memref<1x4x16x16xf32, #tpu.memory_space<vmem>>, vector<1x4x16x16xf32>
    %4 = vector.shape_cast %3 : vector<1x4x16x16xf32> to vector<4x16x16xf32>
    %c0_4 = arith.constant 0 : index
    %c0_5 = arith.constant 0 : index
    %c0_6 = arith.constant 0 : index
    %c0_7 = arith.constant 0 : index
    %5 = vector.load %arg1[%c0_4, %c0_5, %c0_6, %c0_7] : memref<1x4x16x16xf32, #tpu.memory_space<vmem>>, vector<1x4x16x16xf32>
    %6 = vector.shape_cast %5 : vector<1x4x16x16xf32> to vector<4x16x16xf32>
    %7 = arith.subf %4, %6 : vector<4x16x16xf32>
    %c0_8 = arith.constant 0 : index
    %c0_9 = arith.constant 0 : index
    %c0_10 = arith.constant 0 : index
    %c0_11 = arith.constant 0 : index
    %8 = vector.load %arg3[%c0_8, %c0_9, %c0_10, %c0_11] : memref<1x4x16x16xf32, #tpu.memory_space<vmem>>, vector<1x4x16x16xf32>
    %9 = vector.shape_cast %8 : vector<1x4x16x16xf32> to vector<4x16x16xf32>
    %10 = vector.shape_cast %7 : vector<4x16x16xf32> to vector<1x4x16x16xf32>
    tpu.vector_store %arg3[%c0_8, %c0_9, %c0_10, %c0_11], %10 {strides = array<i32>} : memref<1x4x16x16xf32, #tpu.memory_space<vmem>>, vector<1x4x16x16xf32>,
    %c0_12 = arith.constant 0 : index
    %c0_13 = arith.constant 0 : index
    %11 = vector.load %arg4[%c0_12, %c0_13] : memref<4x1xf32, #tpu.memory_space<vmem>>, vector<4x1xf32>
    %cst = arith.constant dense<0.000000e+00> : vector<4x16xf32>
    %12 = vector.multi_reduction <add>, %7, %cst [2] : vector<4x16x16xf32> to vector<4x16xf32>
    %cst_14 = arith.constant dense<0.000000e+00> : vector<4xf32>
    %13 = vector.multi_reduction <add>, %12, %cst_14 [1] : vector<4x16xf32> to vector<4xf32>
    %14 = vector.shape_cast %13 : vector<4xf32> to vector<4x1xf32>
    %15 = arith.addf %11, %14 : vector<4x1xf32>
    %c0_15 = arith.constant 0 : index
    %c0_16 = arith.constant 0 : index
    %16 = vector.load %arg4[%c0_15, %c0_16] : memref<4x1xf32, #tpu.memory_space<vmem>>, vector<4x1xf32>
    tpu.vector_store %arg4[%c0_15, %c0_16], %15 {strides = array<i32>} : memref<4x1xf32, #tpu.memory_space<vmem>>, vector<4x1xf32>,
    %c0_17 = arith.constant 0 : index
    %c0_18 = arith.constant 0 : index
    %17 = vector.load %arg5[%c0_17, %c0_18] : memref<4x1xf32, #tpu.memory_space<vmem>>, vector<4x1xf32>
    %18 = arith.mulf %7, %7 : vector<4x16x16xf32>
    %cst_19 = arith.constant dense<0.000000e+00> : vector<4x16xf32>
    %19 = vector.multi_reduction <add>, %18, %cst_19 [2] : vector<4x16x16xf32> to vector<4x16xf32>
    %cst_20 = arith.constant dense<0.000000e+00> : vector<4xf32>
    %20 = vector.multi_reduction <add>, %19, %cst_20 [1] : vector<4x16xf32> to vector<4xf32>
    %21 = vector.shape_cast %20 : vector<4xf32> to vector<4x1xf32>
    %22 = arith.addf %17, %21 : vector<4x1xf32>
    %c0_21 = arith.constant 0 : index
    %c0_22 = arith.constant 0 : index
    %23 = vector.load %arg5[%c0_21, %c0_22] : memref<4x1xf32, #tpu.memory_space<vmem>>, vector<4x1xf32>
    tpu.vector_store %arg5[%c0_21, %c0_22], %22 {strides = array<i32>} : memref<4x1xf32, #tpu.memory_space<vmem>>, vector<4x1xf32>,
    return
  }
  func.func @transform_0(%arg0: i32) -> (i32, i32, i32, i32) {
    %c0_i32 = arith.constant 0 : i32
    %c0_i32_0 = arith.constant 0 : i32
    %c0_i32_1 = arith.constant 0 : i32
    %c0_i32_2 = arith.constant 0 : i32
    return %arg0, %c0_i32, %c0_i32_0, %c0_i32_1 : i32, i32, i32, i32
  }
  func.func @transform_1(%arg0: i32) -> (i32, i32, i32, i32) {
    %c0_i32 = arith.constant 0 : i32
    %c0_i32_0 = arith.constant 0 : i32
    %c0_i32_1 = arith.constant 0 : i32
    %c0_i32_2 = arith.constant 0 : i32
    return %arg0, %c0_i32, %c0_i32_0, %c0_i32_1 : i32, i32, i32, i32
  }
  func.func @transform_2(%arg0: i32) -> (i32, i32, i32, i32) {
    %c0_i32 = arith.constant 0 : i32
    %c0_i32_0 = arith.constant 0 : i32
    %c0_i32_1 = arith.constant 0 : i32
    %c0_i32_2 = arith.constant 0 : i32
    return %arg0, %c0_i32, %c0_i32_0, %c0_i32_1 : i32, i32, i32, i32
  }
  func.func @transform_3(%arg0: i32) -> (i32, i32) {
    %c0_i32 = arith.constant 0 : i32
    %c0_i32_0 = arith.constant 0 : i32
    %c0_i32_1 = arith.constant 0 : i32
    return %c0_i32, %c0_i32_0 : i32, i32
  }
  func.func @transform_4(%arg0: i32) -> (i32, i32) {
    %c0_i32 = arith.constant 0 : i32
    %c0_i32_0 = arith.constant 0 : i32
    %c0_i32_1 = arith.constant 0 : i32
    return %c0_i32, %c0_i32_0 : i32, i32
  }
}

</mosaic_0001>

<llo_original>
// kernel: tpu_custom_call.1
$region0: #{tpu_custom_call.1}
  #allocation0 [shape = 'u32[]', space=smem, size = 0x4, offset = 0x4, fixed_abs, tag = 'smem constant byte address 0x4 - core index']
  #allocation1 [shape = 'u32[144,128]{1,0:T(1,128)}', space=vmem, size = 0x12000, scoped, tag = 'internal scratch']
  %s0 = inlined_call_operand.hbm [shape: f32[2,4,16,16], index: 0, kind: input, shape index: {}]
  %s1 = inlined_call_operand.hbm [shape: f32[2,4,16,16], index: 1, kind: input, shape index: {}]
  %s2 = inlined_call_operand.hbm [shape: f32[2,4,16,16], index: 2, kind: output, shape index: {0}]
  %s3 = inlined_call_operand.vmem [shape: f32[4,1], index: 3, kind: output, shape index: {1}]
  %s4 = inlined_call_operand.vmem [shape: f32[4,1], index: 4, kind: output, shape index: {2}]
  %5 = xla_tuple %s2, %s3, %s4
  %s6 = sld [smem:[#allocation0]]
  $region69: #{tpu_custom_call.1} parent=0
    _
  %s8 = ssub.s32 1, %s6
  %s9 = scalar_select 0, %s8, %s6
  $region1: #{tpu_custom_call.1} parent=0
    #allocation2 [shape = 'u8[65536]{0}', space=vmem, size = 0x10000, scoped, tag = 'input window, operand 0']
    #allocation3 [shape = 's32[2]{0}', space=sflag, size = 0x8, scoped, tag = 'scoped memory for tpu_custom_call.1']
    #allocation4 [shape = 's32[2]{0}', space=sflag, size = 0x8, scoped, tag = 'scoped memory for tpu_custom_call.1']
    #allocation5 [shape = 'u8[65536]{0}', space=vmem, size = 0x10000, scoped, tag = 'input window, operand 1']
    #allocation6 [shape = 's32[2]{0}', space=sflag, size = 0x8, scoped, tag = 'scoped memory for tpu_custom_call.1']
    #allocation7 [shape = 'u8[65536]{0}', space=vmem, size = 0x10000, scoped, tag = 'output window, operand 0']
    %10 = vsyncpa [#allocation3], 0
    %s11 = scalar_lea.sflag [#allocation3], 1
    %12 = vsyncpa %s11, 0
    %13 = vsyncpa [#allocation6], 0
    %s14 = scalar_lea.sflag [#allocation6], 1
    %15 = vsyncpa %s14, 0
    %16 = vsyncpa [#allocation4], 0
    %s17 = scalar_lea.sflag [#allocation4], 1
    %18 = vsyncpa %s17, 0
    loop: start=0, step=1, limit=4
    $region2: #{tpu_custom_call.1} parent=1 // loop_pre_header
      _
    $region3: #{tpu_custom_call.1} parent=1 // loop_header
      %s20 = sphi 0, %s24
      %p21 = scmp.ge.s32.totalorder %s20, 4
      %s30 = sphi 0, %s32
      %s33 = sphi 0, %s30
      %s34 = sphi 0, %s33
      %s50 = sphi 0, %s34
      %s56 = sphi 0, %s58
      %s59 = sphi 0, %s56
      %s60 = sphi 0, %s59
      %s76 = sphi 0, %s60
      %s82 = sphi 0, %s84
      %s85 = sphi 0, %s82
      %s86 = sphi 0, %s85
      %s102 = sphi 0, %s86
      %s106 = sphi 0, %s106
      %s108 = sphi 0, %s106
      %s109 = sphi 0, %s108
      %s123 = sphi 0, %s109
      %s127 = sphi 0, %s127
      %s129 = sphi 0, %s127
      %s130 = sphi 0, %s129
      %s144 = sphi 0, %s130
    $region4: #{tpu_custom_call.1} parent=1 // loop_header_branch
      %23 = sbr.rel (%p21) target = $region8
    $region5: #{tpu_custom_call.1} parent=1 // loop_body
      %s25 = ssub.s32 %s20, 1
      %s26 = ssub.s32 %s20, 2
      %s27 = sadd.s32 %s20, 1
      %s28 = ssub.s32 %s20, %s27
      %p29 = scmp.eq.s32.totalorder %s28, 0
      %s31 = sadd.s32 %s30, 1
      %s32 = scalar_select %p29, %s30, %s31
      %p35 = pneg %p29
      %p36 = scmp.eq.s32.totalorder %s20, 1
      %p37 = por %p35, %p36
      %p38 = scmp.ne.s32.totalorder %s30, %s33
      %p39 = scmp.eq.s32.totalorder %s20, 0
      %p40 = por %p38, %p39
      %p41 = scmp.ne.s32.totalorder %s30, %s33
      %p42 = scmp.eq.s32.totalorder %s25, 1
      %p43 = por %p41, %p42
      %p44 = scmp.ne.s32.totalorder %s33, %s34
      %p45 = scmp.eq.s32.totalorder %s25, 0
      %p46 = por %p44, %p45
      %p47 = scmp.ne.s32.totalorder %s33, %s34
      %p48 = scmp.eq.s32.totalorder %s26, 1
      %p49 = por %p47, %p48
      %p51 = scmp.ne.s32.totalorder %s34, %s50
      %p52 = scmp.eq.s32.totalorder %s26, 0
      %p53 = por %p51, %p52
      %s54 = ssub.s32 %s20, %s27
      %p55 = scmp.eq.s32.totalorder %s54, 0
      %s57 = sadd.s32 %s56, 1
      %s58 = scalar_select %p55, %s56, %s57
      %p61 = pneg %p55
      %p62 = scmp.eq.s32.totalorder %s20, 1
      %p63 = por %p61, %p62
      %p64 = scmp.ne.s32.totalorder %s56, %s59
      %p65 = scmp.eq.s32.totalorder %s20, 0
      %p66 = por %p64, %p65
      %p67 = scmp.ne.s32.totalorder %s56, %s59
      %p68 = scmp.eq.s32.totalorder %s25, 1
      %p69 = por %p67, %p68
      %p70 = scmp.ne.s32.totalorder %s59, %s60
      %p71 = scmp.eq.s32.totalorder %s25, 0
      %p72 = por %p70, %p71
      %p73 = scmp.ne.s32.totalorder %s59, %s60
      %p74 = scmp.eq.s32.totalorder %s26, 1
      %p75 = por %p73, %p74
      %p77 = scmp.ne.s32.totalorder %s60, %s76
      %p78 = scmp.eq.s32.totalorder %s26, 0
      %p79 = por %p77, %p78
      %s80 = ssub.s32 %s20, %s27
      %p81 = scmp.eq.s32.totalorder %s80, 0
      %s83 = sadd.s32 %s82, 1
      %s84 = scalar_select %p81, %s82, %s83
      %p87 = pneg %p81
      %p88 = scmp.eq.s32.totalorder %s20, 1
      %p89 = por %p87, %p88
      %p90 = scmp.ne.s32.totalorder %s82, %s85
      %p91 = scmp.eq.s32.totalorder %s20, 0
      %p92 = por %p90, %p91
      %p93 = scmp.ne.s32.totalorder %s82, %s85
      %p94 = scmp.eq.s32.totalorder %s25, 1
      %p95 = por %p93, %p94
      %p96 = scmp.ne.s32.totalorder %s85, %s86
      %p97 = scmp.eq.s32.totalorder %s25, 0
      %p98 = por %p96, %p97
      %p99 = scmp.ne.s32.totalorder %s85, %s86
      %p100 = scmp.eq.s32.totalorder %s26, 1
      %p101 = por %p99, %p100
      %p103 = scmp.ne.s32.totalorder %s86, %s102
      %p104 = scmp.eq.s32.totalorder %s26, 0
      %p105 = por %p103, %p104
      %s107 = sadd.s32 %s106, 1
      %p110 = scmp.eq.s32.totalorder %s20, 1
      %p111 = scmp.ne.s32.totalorder %s106, %s108
      %p112 = scmp.eq.s32.totalorder %s20, 0
      %p113 = por %p111, %p112
      %p114 = scmp.ne.s32.totalorder %s106, %s108
      %p115 = scmp.eq.s32.totalorder %s25, 1
      %p116 = por %p114, %p115
      %p117 = scmp.ne.s32.totalorder %s108, %s109
      %p118 = scmp.eq.s32.totalorder %s25, 0
      %p119 = por %p117, %p118
      %p120 = scmp.ne.s32.totalorder %s108, %s109
      %p121 = scmp.eq.s32.totalorder %s26, 1
      %p122 = por %p120, %p121
      %p124 = scmp.ne.s32.totalorder %s109, %s123
      %p125 = scmp.eq.s32.totalorder %s26, 0
      %p126 = por %p124, %p125
      %s128 = sadd.s32 %s127, 1
      %p131 = scmp.eq.s32.totalorder %s20, 1
      %p132 = scmp.ne.s32.totalorder %s127, %s129
      %p133 = scmp.eq.s32.totalorder %s20, 0
      %p134 = por %p132, %p133
      %p135 = scmp.ne.s32.totalorder %s127, %s129
      %p136 = scmp.eq.s32.totalorder %s25, 1
      %p137 = por %p135, %p136
      %p138 = scmp.ne.s32.totalorder %s129, %s130
      %p139 = scmp.eq.s32.totalorder %s25, 0
      %p140 = por %p138, %p139
      %p141 = scmp.ne.s32.totalorder %s129, %s130
      %p142 = scmp.eq.s32.totalorder %s26, 1
      %p143 = por %p141, %p142
      %p145 = scmp.ne.s32.totalorder %s130, %s144
      %p146 = scmp.eq.s32.totalorder %s26, 0
      %p147 = por %p145, %p146
      %p148 = scmp.le.s32.totalorder 1, %s20
      %p149 = scmp.lt.s32.totalorder %s20, 3
      %p150 = pnand %p148, %p149
      %p151 = pneg %p150
      // Predicated region
      $region9: #{tpu_custom_call.1} parent=5 // pred_check
        _
      $region10: #{tpu_custom_call.1} parent=5 // pred_check_branch
        %153 = sbr.rel (%p150) target = $region12
      $region11: #{tpu_custom_call.1} parent=5 // pred_region
        %s154 = ssub.s32 %s20, 1
      $region12: #{tpu_custom_call.1} parent=5 // pred_fallthru
        _
      %p155 = scmp.lt.s32.totalorder %s20, 2
      // Predicated region
      $region13: #{tpu_custom_call.1} parent=5 // pred_check
        %p156 = pneg %p155
      $region14: #{tpu_custom_call.1} parent=5 // pred_check_branch
        %158 = sbr.rel (%p156) target = $region16
      $region15: #{tpu_custom_call.1} parent=5 // pred_region
        // Predicated region
        $region17: #{tpu_custom_call.1} parent=15 // pred_check
          %p159 = pneg %p40
        $region18: #{tpu_custom_call.1} parent=15 // pred_check_branch
          %161 = sbr.rel (%p159) target = $region20
        $region19: #{tpu_custom_call.1} parent=15 // pred_region
          %s162 = sand.u32 %s30, 1
          %s163 = scalar_lea.sflag [#allocation3], %s162
          %s164 = sand.u32 %s30, 1
          %s165 = smul.addr %s164, 64
          %s166 = scalar_lea.vmem [#allocation2], %s165
          %s168 = ssub.s32 1024, 1024
          %169 = vsyncadd %s163, %s168
          %s170 = smul.addr %s20, 8
          %s171 = smul.addr %s170, 128
          %s172 = scalar_lea.hbm %s0, %s171
          %s173 = sshll.u32 %s166, 4
          %s174 = int_to_ptr.vmem [resolvable:$true] %s173
          %179 = dma.hbm_to_vmem [thread:$0]  %s172, 1024, %s174, %s163, 128, 128, 8
        $region20: #{tpu_custom_call.1} parent=15 // pred_fallthru
          _
        // Predicated region
        $region21: #{tpu_custom_call.1} parent=15 // pred_check
          %p180 = pneg %p66
        $region22: #{tpu_custom_call.1} parent=15 // pred_check_branch
          %182 = sbr.rel (%p180) target = $region24
        $region23: #{tpu_custom_call.1} parent=15 // pred_region
          %s183 = sand.u32 %s56, 1
          %s184 = scalar_lea.sflag [#allocation6], %s183
          %s185 = sand.u32 %s56, 1
          %s186 = smul.addr %s185, 64
          %s187 = scalar_lea.vmem [#allocation5], %s186
          %s189 = ssub.s32 1024, 1024
          %190 = vsyncadd %s184, %s189
          %s191 = smul.addr %s20, 8
          %s192 = smul.addr %s191, 128
          %s193 = scalar_lea.hbm %s1, %s192
          %s194 = sshll.u32 %s187, 4
          %s195 = int_to_ptr.vmem [resolvable:$true] %s194
          %200 = dma.hbm_to_vmem [thread:$0]  %s193, 1024, %s195, %s184, 128, 128, 8
        $region24: #{tpu_custom_call.1} parent=15 // pred_fallthru
          _
      $region16: #{tpu_custom_call.1} parent=5 // pred_fallthru
        _
      %p201 = scmp.le.s32.totalorder 1, %s20
      %p202 = scmp.lt.s32.totalorder %s20, 3
      %p203 = pnand %p201, %p202
      %p204 = pneg %p203
      // Predicated region
      $region25: #{tpu_custom_call.1} parent=5 // pred_check
        _
      $region26: #{tpu_custom_call.1} parent=5 // pred_check_branch
        %206 = sbr.rel (%p203) target = $region28
      $region27: #{tpu_custom_call.1} parent=5 // pred_region
        %s207 = ssub.s32 %s20, 1
        %s208 = sand.u32 %s33, 1
        %s209 = scalar_lea.sflag [#allocation3], %s208
        %s210 = sand.u32 %s33, 1
        %s211 = smul.addr %s210, 64
        %s212 = scalar_lea.vmem [#allocation2], %s211
        // Predicated region
        $region29: #{tpu_custom_call.1} parent=27 // pred_check
          %p213 = pneg %p46
        $region30: #{tpu_custom_call.1} parent=27 // pred_check_branch
          %215 = sbr.rel (%p213) target = $region32
        $region31: #{tpu_custom_call.1} parent=27 // pred_region
          %216 = dma.done %s209, 1024
        $region32: #{tpu_custom_call.1} parent=27 // pred_fallthru
          _
        %s217 = sand.u32 %s59, 1
        %s218 = scalar_lea.sflag [#allocation6], %s217
        %s219 = sand.u32 %s59, 1
        %s220 = smul.addr %s219, 64
        %s221 = scalar_lea.vmem [#allocation5], %s220
        // Predicated region
        $region33: #{tpu_custom_call.1} parent=27 // pred_check
          %p222 = pneg %p72
        $region34: #{tpu_custom_call.1} parent=27 // pred_check_branch
          %224 = sbr.rel (%p222) target = $region36
        $region35: #{tpu_custom_call.1} parent=27 // pred_region
          %225 = dma.done %s218, 1024
        $region36: #{tpu_custom_call.1} parent=27 // pred_fallthru
          _
        %s226 = sand.u32 %s33, 1
        %s227 = scalar_lea.sflag [#allocation3], %s226
        %s228 = sand.u32 %s33, 1
        %s229 = smul.addr %s228, 64
        %s230 = scalar_lea.vmem [#allocation2], %s229
        %p231 = pneg %p46
        %p232 = pneg %p43
        %s233 = sand.u32 %s59, 1
        %s234 = scalar_lea.sflag [#allocation6], %s233
        %s235 = sand.u32 %s59, 1
        %s236 = smul.addr %s235, 64
        %s237 = scalar_lea.vmem [#allocation5], %s236
        %p238 = pneg %p72
        %p239 = pneg %p69
        %p240 = pneg %p98
        %p241 = pneg %p95
        %s242 = sand.u32 %s85, 1
        %s243 = scalar_lea.sflag [#allocation4], %s242
        %s244 = sand.u32 %s85, 1
        %s245 = smul.addr %s244, 64
        %s246 = scalar_lea.vmem [#allocation7], %s245
        %p247 = pneg %p119
        %p248 = pneg %p116
        %p249 = pneg %p140
        %p250 = pneg %p137
        %p251 = scmp.eq.s32.totalorder %s25, 0
        // Predicated region
        $region37: #{tpu_custom_call.1} parent=27 // pred_check
          %p252 = pneg %p251
        $region38: #{tpu_custom_call.1} parent=27 // pred_check_branch
          %254 = sbr.rel (%p252) target = $region40
        $region39: #{tpu_custom_call.1} parent=27 // pred_region
          %vm255 = vcmask 3072
          %256 = vst.msk [vmem:[%s3] sm:$0xf] %vm255, 0.0
          %257 = vst.msk [vmem:[%s4] sm:$0xf] %vm255, 0.0
        $region40: #{tpu_custom_call.1} parent=27 // pred_fallthru
          _
        %v258 = vld [vmem:[%s221] sm:$0xff]
        %v259 = vld [vmem:[%s221 + $0x8] sm:$0xff]
        %v260 = vld [vmem:[%s221 + $0x10] sm:$0xff]
        %v261 = vld [vmem:[%s221 + $0x18] sm:$0xff]
        %v262 = vld [vmem:[%s221 + $0x20] sm:$0xff]
        %v263 = vld [vmem:[%s221 + $0x28] sm:$0xff]
        %v264 = vld [vmem:[%s221 + $0x30] sm:$0xff]
        %v265 = vld [vmem:[%s221 + $0x38] sm:$0xff]
        %v266 = vld [vmem:[%s212] sm:$0xff]
        %v267 = vld [vmem:[%s212 + $0x8] sm:$0xff]
        %v268 = vld [vmem:[%s212 + $0x10] sm:$0xff]
        %v269 = vld [vmem:[%s212 + $0x18] sm:$0xff]
        %v270 = vld [vmem:[%s212 + $0x20] sm:$0xff]
        %v271 = vld [vmem:[%s212 + $0x28] sm:$0xff]
        %v272 = vld [vmem:[%s212 + $0x30] sm:$0xff]
        %v273 = vld [vmem:[%s212 + $0x38] sm:$0xff]
        %v274 = vsub.f32 %v258, %v266
        %v275 = vsub.f32 %v259, %v267
        %v276 = vsub.f32 %v260, %v268
        %v277 = vsub.f32 %v261, %v269
        %v278 = vsub.f32 %v262, %v270
        %v279 = vsub.f32 %v263, %v271
        %v280 = vsub.f32 %v264, %v272
        %v281 = vsub.f32 %v265, %v273
        %vm282 = vcmask 130048
        %283 = vst.msk [vmem:[%s246] sm:$0xff] %vm282, %v274
        %284 = vst.msk [vmem:[%s246 + $0x8] sm:$0xff] %vm282, %v275
        %285 = vst.msk [vmem:[%s246 + $0x10] sm:$0xff] %vm282, %v276
        %286 = vst.msk [vmem:[%s246 + $0x18] sm:$0xff] %vm282, %v277
        %287 = vst.msk [vmem:[%s246 + $0x20] sm:$0xff] %vm282, %v278
        %288 = vst.msk [vmem:[%s246 + $0x28] sm:$0xff] %vm282, %v279
        %289 = vst.msk [vmem:[%s246 + $0x30] sm:$0xff] %vm282, %v280
        %290 = vst.msk [vmem:[%s246 + $0x38] sm:$0xff] %vm282, %v281
        %v291 = vld [vmem:[%s3] sm:$0xf]
        %v292 = vsel %vm282, %v274, 0.0
        %293 = vadd.xlane.f32.xlu0 %v292
        %v294 = vpop.xlane.xlu0 %293
        %v295 = vsel %vm282, %v275, 0.0
        %296 = vadd.xlane.f32.xlu0 %v295
        %v297 = vpop.xlane.xlu0 %296
        %v298 = vsel %vm282, %v276, 0.0
        %299 = vadd.xlane.f32.xlu0 %v298
        %v300 = vpop.xlane.xlu0 %299
        %v301 = vsel %vm282, %v277, 0.0
        %302 = vadd.xlane.f32.xlu0 %v301
        %v303 = vpop.xlane.xlu0 %302
        %v304 = vsel %vm282, %v278, 0.0
        %305 = vadd.xlane.f32.xlu0 %v304
        %v306 = vpop.xlane.xlu0 %305
        %v307 = vsel %vm282, %v279, 0.0
        %308 = vadd.xlane.f32.xlu0 %v307
        %v309 = vpop.xlane.xlu0 %308
        %v310 = vsel %vm282, %v280, 0.0
        %311 = vadd.xlane.f32.xlu0 %v310
        %v312 = vpop.xlane.xlu0 %311
        %v313 = vsel %vm282, %v281, 0.0
        %314 = vadd.xlane.f32.xlu0 %v313
        %v315 = vpop.xlane.xlu0 %314
        %v324 = vlaneseq
        %v325 = vand.u32 %v324, 127
        %v326 = vlaneseq
        %v327 = vshrl.u32 %v326, 7
        %v328 = vsub.s32 %v325, %v327
        %v329 = vrot.slane %v294, %v328
        %v330 = vadd.s32 %v325, 4294967288
        %v331 = vlaneseq
        %v332 = vshrl.u32 %v331, 7
        %v333 = vsub.s32 %v330, %v332
        %v334 = vrot.slane %v297, %v333
        %vm335 = vcmask 130112
        %v336 = vsel %vm335, %v334, %v329
        %v337 = vlaneseq
        %v338 = vshrl.u32 %v337, 7
        %v339 = vsub.s32 %v325, %v338
        %v340 = vrot.slane %v300, %v339
        %v341 = vlaneseq
        %v342 = vshrl.u32 %v341, 7
        %v343 = vsub.s32 %v330, %v342
        %v344 = vrot.slane %v303, %v343
        %v345 = vsel %vm335, %v344, %v340
        %v346 = vlaneseq
        %v347 = vshrl.u32 %v346, 7
        %v348 = vsub.s32 %v325, %v347
        %v349 = vrot.slane %v306, %v348
        %v350 = vlaneseq
        %v351 = vshrl.u32 %v350, 7
        %v352 = vsub.s32 %v330, %v351
        %v353 = vrot.slane %v309, %v352
        %v354 = vsel %vm335, %v353, %v349
        %v355 = vlaneseq
        %v356 = vshrl.u32 %v355, 7
        %v357 = vsub.s32 %v325, %v356
        %v358 = vrot.slane %v312, %v357
        %v359 = vlaneseq
        %v360 = vshrl.u32 %v359, 7
        %v361 = vsub.s32 %v330, %v360
        %v362 = vrot.slane %v315, %v361
        %v363 = vsel %vm335, %v362, %v358
        %vm364 = vcmask 1041409
        %v365 = vsel %vm364, %v345, %v336
        %vm366 = vcmask 1042434
        %v367 = vsel %vm366, %v354, %v365
        %vm368 = vcmask 1043459
        %v369 = vsel %vm368, %v363, %v367
        %vm371 = vcmask 125952
        %v372 = vsel %vm371, %v369, 0.0
        %373 = vadd.xlane.f32.xlu0 %v372
        %v374 = vpop.xlane.xlu0 %373
        %v375 = vadd.f32 %v291, %v374
        %vm376 = vcmask 3072
        %377 = vst.msk [vmem:[%s3] sm:$0xf] %vm376, %v375
        %v378 = vld [vmem:[%s4] sm:$0xf]
        %v379 = vmul.f32 %v274, %v274
        %v380 = vmul.f32 %v275, %v275
        %v381 = vmul.f32 %v276, %v276
        %v382 = vmul.f32 %v277, %v277
        %v383 = vmul.f32 %v278, %v278
        %v384 = vmul.f32 %v279, %v279
        %v385 = vmul.f32 %v280, %v280
        %v386 = vmul.f32 %v281, %v281
        %v387 = vsel %vm282, %v379, 0.0
        %388 = vadd.xlane.f32.xlu0 %v387
        %v389 = vpop.xlane.xlu0 %388
        %v390 = vsel %vm282, %v380, 0.0
        %391 = vadd.xlane.f32.xlu0 %v390
        %v392 = vpop.xlane.xlu0 %391
        %v393 = vsel %vm282, %v381, 0.0
        %394 = vadd.xlane.f32.xlu0 %v393
        %v395 = vpop.xlane.xlu0 %394
        %v396 = vsel %vm282, %v382, 0.0
        %397 = vadd.xlane.f32.xlu0 %v396
        %v398 = vpop.xlane.xlu0 %397
        %v399 = vsel %vm282, %v383, 0.0
        %400 = vadd.xlane.f32.xlu0 %v399
        %v401 = vpop.xlane.xlu0 %400
        %v402 = vsel %vm282, %v384, 0.0
        %403 = vadd.xlane.f32.xlu0 %v402
        %v404 = vpop.xlane.xlu0 %403
        %v405 = vsel %vm282, %v385, 0.0
        %406 = vadd.xlane.f32.xlu0 %v405
        %v407 = vpop.xlane.xlu0 %406
        %v408 = vsel %vm282, %v386, 0.0
        %409 = vadd.xlane.f32.xlu0 %v408
        %v410 = vpop.xlane.xlu0 %409
        %v419 = vlaneseq
        %v420 = vshrl.u32 %v419, 7
        %v421 = vsub.s32 %v325, %v420
        %v422 = vrot.slane %v389, %v421
        %v423 = vlaneseq
        %v424 = vshrl.u32 %v423, 7
        %v425 = vsub.s32 %v330, %v424
        %v426 = vrot.slane %v392, %v425
        %v427 = vsel %vm335, %v426, %v422
        %v428 = vlaneseq
        %v429 = vshrl.u32 %v428, 7
        %v430 = vsub.s32 %v325, %v429
        %v431 = vrot.slane %v395, %v430
        %v432 = vlaneseq
        %v433 = vshrl.u32 %v432, 7
        %v434 = vsub.s32 %v330, %v433
        %v435 = vrot.slane %v398, %v434
        %v436 = vsel %vm335, %v435, %v431
        %v437 = vlaneseq
        %v438 = vshrl.u32 %v437, 7
        %v439 = vsub.s32 %v325, %v438
        %v440 = vrot.slane %v401, %v439
        %v441 = vlaneseq
        %v442 = vshrl.u32 %v441, 7
        %v443 = vsub.s32 %v330, %v442
        %v444 = vrot.slane %v404, %v443
        %v445 = vsel %vm335, %v444, %v440
        %v446 = vlaneseq
        %v447 = vshrl.u32 %v446, 7
        %v448 = vsub.s32 %v325, %v447
        %v449 = vrot.slane %v407, %v448
        %v450 = vlaneseq
        %v451 = vshrl.u32 %v450, 7
        %v452 = vsub.s32 %v330, %v451
        %v453 = vrot.slane %v410, %v452
        %v454 = vsel %vm335, %v453, %v449
        %v455 = vsel %vm364, %v436, %v427
        %v456 = vsel %vm366, %v445, %v455
        %v457 = vsel %vm368, %v454, %v456
        %v459 = vsel %vm371, %v457, 0.0
        %460 = vadd.xlane.f32.xlu0 %v459
        %v461 = vpop.xlane.xlu0 %460
        %v462 = vadd.f32 %v378, %v461
        %463 = vst.msk [vmem:[%s4] sm:$0xf] %vm376, %v462
        %s464 = sand.u32 %s85, 1
        %s465 = scalar_lea.sflag [#allocation4], %s464
        %s466 = sand.u32 %s85, 1
        %s467 = smul.addr %s466, 64
        %s468 = scalar_lea.vmem [#allocation7], %s467
        // Predicated region
        $region41: #{tpu_custom_call.1} parent=27 // pred_check
          %p469 = pneg %p95
        $region42: #{tpu_custom_call.1} parent=27 // pred_check_branch
          %471 = sbr.rel (%p469) target = $region44
        $region43: #{tpu_custom_call.1} parent=27 // pred_region
          %s473 = ssub.s32 1024, 1024
          %474 = vsyncadd %s465, %s473
          %s475 = smul.addr %s25, 8
          %s476 = smul.addr %s475, 128
          %s477 = scalar_lea.hbm %s2, %s476
          %s478 = sshll.u32 %s468, 4
          %s479 = int_to_ptr.vmem [resolvable:$true] %s478
          %484 = dma.vmem_to_hbm [thread:$0]  %s479, 1024, %s477, %s465, 128, 128, 8
        $region44: #{tpu_custom_call.1} parent=27 // pred_fallthru
          _
        // Predicated region
        $region45: #{tpu_custom_call.1} parent=27 // pred_check
          %p485 = pneg %p116
        $region46: #{tpu_custom_call.1} parent=27 // pred_check_branch
          %487 = sbr.rel (%p485) target = $region48
        $region47: #{tpu_custom_call.1} parent=27 // pred_region
          _
        $region48: #{tpu_custom_call.1} parent=27 // pred_fallthru
          _
        // Predicated region
        $region49: #{tpu_custom_call.1} parent=27 // pred_check
          %p488 = pneg %p137
        $region50: #{tpu_custom_call.1} parent=27 // pred_check_branch
          %490 = sbr.rel (%p488) target = $region52
        $region51: #{tpu_custom_call.1} parent=27 // pred_region
          _
        $region52: #{tpu_custom_call.1} parent=27 // pred_fallthru
          _
        // Predicated region
        $region53: #{tpu_custom_call.1} parent=27 // pred_check
          %p491 = pneg %p116
        $region54: #{tpu_custom_call.1} parent=27 // pred_check_branch
          %493 = sbr.rel (%p491) target = $region56
        $region55: #{tpu_custom_call.1} parent=27 // pred_region
          _
        $region56: #{tpu_custom_call.1} parent=27 // pred_fallthru
          _
        // Predicated region
        $region57: #{tpu_custom_call.1} parent=27 // pred_check
          %p494 = pneg %p137
        $region58: #{tpu_custom_call.1} parent=27 // pred_check_branch
          %496 = sbr.rel (%p494) target = $region60
        $region59: #{tpu_custom_call.1} parent=27 // pred_region
          _
        $region60: #{tpu_custom_call.1} parent=27 // pred_fallthru
          _
      $region28: #{tpu_custom_call.1} parent=5 // pred_fallthru
        _
      %p497 = scmp.le.s32.totalorder 2, %s20
      // Predicated region
      $region61: #{tpu_custom_call.1} parent=5 // pred_check
        %p498 = pneg %p497
      $region62: #{tpu_custom_call.1} parent=5 // pred_check_branch
        %500 = sbr.rel (%p498) target = $region64
      $region63: #{tpu_custom_call.1} parent=5 // pred_region
        %s501 = ssub.s32 %s20, 2
        // Predicated region
        $region65: #{tpu_custom_call.1} parent=63 // pred_check
          %p502 = pneg %p101
        $region66: #{tpu_custom_call.1} parent=63 // pred_check_branch
          %504 = sbr.rel (%p502) target = $region68
        $region67: #{tpu_custom_call.1} parent=63 // pred_region
          %s505 = sand.u32 %s86, 1
          %s506 = scalar_lea.sflag [#allocation4], %s505
          %s507 = sand.u32 %s86, 1
          %s508 = smul.addr %s507, 64
          %s509 = scalar_lea.vmem [#allocation7], %s508
          %510 = dma.done %s506, 1024
        $region68: #{tpu_custom_call.1} parent=63 // pred_fallthru
          _
      $region64: #{tpu_custom_call.1} parent=5 // pred_fallthru
        _
    $region6: #{tpu_custom_call.1} parent=1 // loop_footer
      %s24 = sadd.s32 1, %s20
    $region7: #{tpu_custom_call.1} parent=1 // loop_footer_branch
      %19 = sbr.rel target = $region3
    $region8: #{tpu_custom_call.1} parent=1 // loop_exit
      _
    %511 = vsyncpa [#allocation3], 1
    %s512 = scalar_lea.sflag [#allocation3], 1
    %513 = vsyncpa %s512, 1
    %514 = vsyncpa [#allocation6], 1
    %s515 = scalar_lea.sflag [#allocation6], 1
    %516 = vsyncpa %s515, 1
    %517 = vsyncpa [#allocation4], 1
    %s518 = scalar_lea.sflag [#allocation4], 1
    %519 = vsyncpa %s518, 1

</llo_original>
